<compile_context>
chip_gen: v7x
topology: tpu7x:2x2x1
jax: 0.10.0
libtpu: 0.0.40
codegen_flags: <defaults>
</compile_context>

<pallas_src>
import jax
import jax.numpy as jnp
from jax.experimental import pallas as pl
from jax.experimental.pallas import tpu as pltpu


def linear_sigmoid_kernel(w_ref, b_ref, xt_ref, o_ref):
    # w_ref:  SMEM (2,)        -- [w0, w1]
    # b_ref:  SMEM (1,)        -- bias
    # xt_ref: VMEM (2, TILE)   -- lane-dense feature rows for this tile
    # o_ref:  VMEM (1, TILE)   -- lane-dense sigmoid output
    x = xt_ref[...].astype(jnp.float32)              # (2, TILE)
    w0 = w_ref[0]
    w1 = w_ref[1]
    b = b_ref[0]
    # Two scalar-splat FMAs on full 128-lane rows -> (1, TILE)
    z = w0 * x[0:1, :] + w1 * x[1:2, :] + b
    # Numerically stable sigmoid (EUP exp path).
    o_ref[...] = jax.nn.sigmoid(z).astype(o_ref.dtype)


def binary_classifier_forward(x, weight, bias, *, tile_n=512):
    """x: (N, 2); weight: (1, 2); bias: (1,) -> (N, 1) float32.

    Matches torch: sigmoid(x @ weight.T + bias).
    """
    n, f = x.shape
    assert f == 2, "BinaryClassifier expects 2 input features"

    # Lane-dense tile size: multiple of 128, capped for tiny batches so we
    # don't pad a 8-row test out to 512 columns.  512 rows/step keeps the
    # double-buffered footprint tiny even on v7x's 64 MiB VMEM.
    tile_n = max(128, min(tile_n, pl.cdiv(n, 128) * 128))
    n_pad = pl.cdiv(n, tile_n) * tile_n

    # Layout plumbing in the wrapper: (N, 2) -> (2, N_pad) lane-dense slab.
    x_t = jnp.swapaxes(x, 0, 1)
    if n_pad != n:
        x_t = jnp.pad(x_t, ((0, 0), (0, n_pad - n)))

    w_flat = weight.reshape(2).astype(jnp.float32)
    b_flat = bias.reshape(1).astype(jnp.float32)

    out_t = pl.pallas_call(
        linear_sigmoid_kernel,
        out_shape=jax.ShapeDtypeStruct((1, n_pad), jnp.float32),
        grid=(n_pad // tile_n,),
        in_specs=[
            # weight / bias: whole arrays in SMEM, read as scalars.
            pl.BlockSpec(memory_space=pltpu.MemorySpace.SMEM),
            pl.BlockSpec(memory_space=pltpu.MemorySpace.SMEM),
            # x: lane-dense (2, TILE) blocks marching along the batch axis.
            pl.BlockSpec((2, tile_n), lambda i: (0, i)),
        ],
        out_specs=pl.BlockSpec((1, tile_n), lambda i: (0, i)),
        compiler_params=pltpu.CompilerParams(
            dimension_semantics=("parallel",),
        ),
    )(w_flat, b_flat, x_t)

    # Back to the PyTorch-facing (N, 1) shape.
    return out_t[0, :n].reshape(n, 1)


if __name__ == "__main__":
    key = jax.random.PRNGKey(0)
    kx, kw, kb = jax.random.split(key, 3)

    # Small deterministic inputs / parameters (nn.Linear(2, 1) shapes).
    N = 8
    x = jax.random.normal(kx, (N, 2), dtype=jnp.float32)
    # Mimic PyTorch's default uniform(-1/sqrt(fan_in), 1/sqrt(fan_in)) init.
    bound = 1.0 / jnp.sqrt(2.0)
    weight = jax.random.uniform(kw, (1, 2), minval=-bound, maxval=bound,
                                dtype=jnp.float32)
    bias = jax.random.uniform(kb, (1,), minval=-bound, maxval=bound,
                              dtype=jnp.float32)

    out = binary_classifier_forward(x, weight, bias)
    out = jax.block_until_ready(out)

    # Pure-JAX reference (same semantics as torch: x @ W.T + b, sigmoid).
    ref = jax.nn.sigmoid(x @ weight.T + bias)
    assert out.shape == (N, 1)
    assert jnp.allclose(out, ref, atol=1e-6, rtol=1e-6)

    print("KERNEL_OK")
</pallas_src>

<mosaic_0001>
module attributes {stable_mosaic.version = 11 : i64} {
  func.func @linear_sigmoid_kernel(%arg0: i32, %arg1: memref<2xf32, #tpu.memory_space<smem>>, %arg2: memref<1xf32, #tpu.memory_space<smem>>, %arg3: memref<2x128xf32, #tpu.memory_space<vmem>>, %arg4: memref<1x128xf32, #tpu.memory_space<vmem>>) attributes {dimension_semantics = [#tpu.dimension_semantics<parallel>], iteration_bounds = array<i64: 1>, scalar_prefetch = 0 : i64, scratch_operands = 0 : i64, tpu.core_type = #tpu.core_type<tc>, window_params = [{transform_indices = @transform_0, window_bounds = array<i64: 2>}, {transform_indices = @transform_1, window_bounds = array<i64: 1>}, {transform_indices = @transform_2, window_bounds = array<i64: 2, 128>}, {transform_indices = @transform_3, window_bounds = array<i64: 1, 128>}]} {
    %c0 = arith.constant 0 : index
    %c0_0 = arith.constant 0 : index
    %0 = vector.load %arg3[%c0, %c0_0] : memref<2x128xf32, #tpu.memory_space<vmem>>, vector<2x128xf32>
    %c0_1 = arith.constant 0 : index
    %1 = memref.load %arg1[%c0_1] : memref<2xf32, #tpu.memory_space<smem>>
    %c1 = arith.constant 1 : index
    %2 = memref.load %arg1[%c1] : memref<2xf32, #tpu.memory_space<smem>>
    %c0_2 = arith.constant 0 : index
    %3 = memref.load %arg2[%c0_2] : memref<1xf32, #tpu.memory_space<smem>>
    %4 = vector.extract_strided_slice %0 {offsets = [0, 0], sizes = [1, 128], strides = [1, 1]} : vector<2x128xf32> to vector<1x128xf32>
    %5 = vector.broadcast %1 : f32 to vector<1x128xf32>
    %6 = arith.mulf %5, %4 : vector<1x128xf32>
    %7 = vector.extract_strided_slice %0 {offsets = [1, 0], sizes = [1, 128], strides = [1, 1]} : vector<2x128xf32> to vector<1x128xf32>
    %8 = vector.broadcast %2 : f32 to vector<1x128xf32>
    %9 = arith.mulf %8, %7 : vector<1x128xf32>
    %10 = arith.addf %6, %9 : vector<1x128xf32>
    %11 = vector.broadcast %3 : f32 to vector<1x128xf32>
    %12 = arith.addf %10, %11 : vector<1x128xf32>
    %13 = arith.negf %12 : vector<1x128xf32>
    %14 = math.exp %13 : vector<1x128xf32>
    %cst = arith.constant 1.000000e+00 : f32
    %15 = vector.broadcast %cst : f32 to vector<1x128xf32>
    %16 = arith.addf %15, %14 : vector<1x128xf32>
    %17 = arith.divf %15, %16 : vector<1x128xf32>
    %c0_3 = arith.constant 0 : index
    %c0_4 = arith.constant 0 : index
    %18 = vector.load %arg4[%c0_3, %c0_4] : memref<1x128xf32, #tpu.memory_space<vmem>>, vector<1x128xf32>
    tpu.vector_store %arg4[%c0_3, %c0_4], %17 {strides = array<i32>} : memref<1x128xf32, #tpu.memory_space<vmem>>, vector<1x128xf32>,
    return
  }
  func.func @transform_0(%arg0: i32) -> i32 {
    %c0_i32 = arith.constant 0 : i32
    %c0_i32_0 = arith.constant 0 : i32
    return %c0_i32 : i32
  }
  func.func @transform_1(%arg0: i32) -> i32 {
    %c0_i32 = arith.constant 0 : i32
    %c0_i32_0 = arith.constant 0 : i32
    return %c0_i32 : i32
  }
  func.func @transform_2(%arg0: i32) -> (i32, i32) {
    %c0_i32 = arith.constant 0 : i32
    %c0_i32_0 = arith.constant 0 : i32
    return %c0_i32, %arg0 : i32, i32
  }
  func.func @transform_3(%arg0: i32) -> (i32, i32) {
    %c0_i32 = arith.constant 0 : i32
    %c0_i32_0 = arith.constant 0 : i32
    return %c0_i32, %arg0 : i32, i32
  }
}

</mosaic_0001>

<llo_original>
// kernel: tpu_custom_call.1
$region0: #{tpu_custom_call.1}
  #allocation0 [shape = 'u32[]', space=smem, size = 0x4, offset = 0x4, fixed_abs, tag = 'smem constant byte address 0x4 - core index']
  #allocation1 [shape = 'u32[144,128]{1,0:T(1,128)}', space=vmem, size = 0x12000, scoped, tag = 'internal scratch']
  #allocation2 [shape = 'f32[1]{0:T(128)S(6)}', space=smem, size = 0x200, scoped, tag = 'scoped memory for tpu_custom_call.1']
  %s0 = inlined_call_operand.vmem [shape: f32[2], index: 0, kind: input, shape index: {}]
  %s1 = inlined_call_operand.<no memory space> [shape: f32[1], index: 1, kind: input, shape index: {}]
  %s2 = inlined_call_operand.vmem [shape: f32[2,128], index: 2, kind: input, shape index: {}]
  %s3 = inlined_call_operand.hbm [shape: f32[1,128], index: 3, kind: output, shape index: {}]
  %s4 = sld [smem:[#allocation0]]
  $region26: #{tpu_custom_call.1} parent=0
    _
  %s6 = ssub.s32 1, %s4
  %s7 = scalar_select 0, %s6, %s4
  %8 = sst [smem:[#allocation2]] %s1
  $region1: #{tpu_custom_call.1} parent=0
    #allocation3 [shape = 'u8[512]{0}', space=smem, size = 0x200, scoped, tag = 'input window, operand 0, single buffered']
    #allocation4 [shape = 's32[1]{0}', space=sflag, size = 0x4, scoped, tag = 'scoped memory for tpu_custom_call.1']
    #allocation5 [shape = 's32[1]{0}', space=sflag, size = 0x4, scoped, tag = 'scoped memory for tpu_custom_call.1']
    #allocation6 [shape = 'u8[512]{0}', space=vmem, size = 0x400, scoped, tag = 'output window, operand 0, single buffered']
    %9 = vsyncpa [#allocation5], 0
    %10 = vsyncpa [#allocation4], 0
    // Predicated region
    $region2: #{tpu_custom_call.1} parent=1 // pred_check
      _
    $region3: #{tpu_custom_call.1} parent=1 // pred_check_branch
      %12 = sbr.rel (0) target = $region5
    $region4: #{tpu_custom_call.1} parent=1 // pred_region
      %s14 = ssub.s32 16, 16
      %15 = vsyncadd [#allocation5], %s14
      %s17 = sshll.u32 %s0, 4
      %s18 = int_to_ptr.vmem [resolvable:$true] %s17
      %20 = dma.vmem_to_smem %s18, 16, [#allocation3], [#allocation5]
    $region5: #{tpu_custom_call.1} parent=1 // pred_fallthru
      _
    // Predicated region
    $region6: #{tpu_custom_call.1} parent=1 // pred_check
      _
    $region7: #{tpu_custom_call.1} parent=1 // pred_check_branch
      %22 = sbr.rel (0) target = $region9
    $region8: #{tpu_custom_call.1} parent=1 // pred_region
      _
    $region9: #{tpu_custom_call.1} parent=1 // pred_fallthru
      _
    // Predicated region
    $region10: #{tpu_custom_call.1} parent=1 // pred_check
      _
    $region11: #{tpu_custom_call.1} parent=1 // pred_check_branch
      %24 = sbr.rel (0) target = $region13
    $region12: #{tpu_custom_call.1} parent=1 // pred_region
      _
    $region13: #{tpu_custom_call.1} parent=1 // pred_fallthru
      _
    // Predicated region
    $region14: #{tpu_custom_call.1} parent=1 // pred_check
      _
    $region15: #{tpu_custom_call.1} parent=1 // pred_check_branch
      %26 = sbr.rel (0) target = $region17
    $region16: #{tpu_custom_call.1} parent=1 // pred_region
      %27 = dma.done [#allocation5], 16
    $region17: #{tpu_custom_call.1} parent=1 // pred_fallthru
      _
    %28 = sfence
    %v29 = vld [vmem:[%s2] sm:$0x3]
    %s30 = sld [smem:[#allocation3]]
    %s31 = sld [smem:[#allocation3 + $0x1]]
    %s32 = sld [smem:[#allocation2]]
    %v33 = vstv %s30
    %v34 = vmul.f32 %v33, %v29
    %v35 = vstv %s31
    %v36 = vmul.f32 %v35, %v29
    %v38 = vrot.slane %v36, 1
    %v40 = vadd.f32 %v34, %v38
    %v41 = vstv %s32
    %v42 = vadd.f32 %v40, %v41
    %v43 = vxor.u32 %v42, 2147483648
    %v44 = vmul.f32 %v43, 1.442695
    %v45 = vpow.pop %v44
    %v46 = vadd.f32 %v45, 1.0
    %v47 = vrcp.pop %v46
    %v48 = vmul.f32 1.0, %v47
    %49 = vst [vmem:[#allocation6] sm:$0x1] %v48
    // Predicated region
    $region18: #{tpu_custom_call.1} parent=1 // pred_check
      _
    $region19: #{tpu_custom_call.1} parent=1 // pred_check_branch
      %51 = sbr.rel (0) target = $region21
    $region20: #{tpu_custom_call.1} parent=1 // pred_region
      %s53 = ssub.s32 16, 16
      %54 = vsyncadd [#allocation4], %s53
      %s56 = sshll.u32 [#allocation6], 4
      %s57 = int_to_ptr.vmem [resolvable:$true] %s56
      %59 = dma.vmem_to_hbm [thread:$0]  %s57, 16, %s3, [#allocation4]
    $region21: #{tpu_custom_call.1} parent=1 // pred_fallthru
      _
    // Predicated region
    $region22: #{tpu_custom_call.1} parent=1 // pred_check
      _
    $region23: #{tpu_custom_call.1} parent=1 // pred_check_branch
      %61 = sbr.rel (0) target = $region25
    $region24: #{tpu_custom_call.1} parent=1 // pred_region
      %62 = dma.done [#allocation4], 16
    $region25: #{tpu_custom_call.1} parent=1 // pred_fallthru
      _
    %63 = vsyncpa [#allocation4], 1
    %64 = vsyncpa [#allocation5], 1

</llo_original>
